<compile_context>
chip_gen: v7x
topology: tpu7x:2x2x1
jax: 0.10.0
libtpu: 0.0.40
codegen_flags: <defaults>
</compile_context>

<pallas_src>
import functools

import jax
import jax.numpy as jnp
from jax import lax
from jax.experimental import pallas as pl
from jax.experimental.pallas import tpu as pltpu

NEG_SLOPE = 0.01    # F.leaky_relu default
BN_EPS = 1e-5       # nn.BatchNorm1d default
LANE = 128
SUBLANE = 8


def _round_up(x, m):
    return (x + m - 1) // m * m


def _leaky_relu(x):
    return jnp.where(x > 0, x, NEG_SLOPE * x)


# ----------------------------------------------------------------------------
# Phase 1: h2 = leaky_relu(leaky_relu(x@W1 + b1)@W2 + b2), plus per-feature
# sum / sum-of-squares accumulation for the batch statistics.
# ----------------------------------------------------------------------------
def _fwd_stats_kernel(x_ref, w1_ref, b1_ref, w2_ref, b2_ref,
                      h2_ref, stats_ref, *, block_n, n_true, needs_mask):
    i = pl.program_id(0)

    @pl.when(i == 0)
    def _():
        stats_ref[...] = jnp.zeros_like(stats_ref)

    x = x_ref[...]                                     # (tm, Dp), f32 or bf16

    # Linear 1 (D -> 2D) on the MXU, f32 accumulation; bias/activation in f32.
    h1 = jnp.dot(x, w1_ref[...], preferred_element_type=jnp.float32)
    h1 = _leaky_relu(h1 + b1_ref[...])

    # Linear 2 (2D -> D); cast to the matmul dtype only at the MXU boundary.
    h2 = jnp.dot(h1.astype(w2_ref.dtype), w2_ref[...],
                 preferred_element_type=jnp.float32)
    h2 = _leaky_relu(h2 + b2_ref[...])

    h2_ref[...] = h2.astype(h2_ref.dtype)

    # Accumulate BN statistics in f32, excluding padded batch rows.
    if needs_mask:
        row = i * block_n + lax.broadcasted_iota(jnp.int32, h2.shape, 0)
        h2s = jnp.where(row < n_true, h2, 0.0)
    else:
        h2s = h2
    s = jnp.sum(h2s, axis=0, keepdims=True)            # (1, Dp)
    sq = jnp.sum(h2s * h2s, axis=0, keepdims=True)     # (1, Dp)
    stats_ref[...] += jnp.concatenate([s, sq], axis=0)  # (2, Dp) accumulator


# ----------------------------------------------------------------------------
# Phase 2: folded BatchNorm affine, y = h2 * scale + shift  (single FMA).
# ----------------------------------------------------------------------------
def _bn_apply_kernel(h2_ref, scale_ref, shift_ref, o_ref):
    o_ref[...] = (h2_ref[...] * scale_ref[...] + shift_ref[...]).astype(o_ref.dtype)


# ----------------------------------------------------------------------------
# Wrapper
# ----------------------------------------------------------------------------
def filter_forward(x, w1, b1, w2, b2, gamma, beta, *,
                   block_n=512, matmul_dtype=None,
                   vmem_limit_bytes=32 * 1024 * 1024):
    """Forward pass of Filter. Weights stored pre-transposed as (in, out)."""
    n, d = x.shape
    d2 = w1.shape[1]
    assert w1.shape == (d, d2) and w2.shape == (d2, d)

    out_dtype = x.dtype
    mm_dtype = x.dtype if matmul_dtype is None else matmul_dtype
    f32 = jnp.float32

    # Lane-dense feature padding, sublane/tile-friendly batch padding.
    d_p = _round_up(d, LANE)
    d2_p = _round_up(d2, LANE)
    tm = min(_round_up(block_n, SUBLANE), _round_up(n, SUBLANE))
    n_p = _round_up(n, tm)
    needs_mask = (n_p != n)

    x_p = jnp.zeros((n_p, d_p), mm_dtype).at[:n, :d].set(x.astype(mm_dtype))
    w1_p = jnp.zeros((d_p, d2_p), mm_dtype).at[:d, :d2].set(w1.astype(mm_dtype))
    w2_p = jnp.zeros((d2_p, d_p), mm_dtype).at[:d2, :d].set(w2.astype(mm_dtype))
    b1_p = jnp.zeros((1, d2_p), f32).at[:, :d2].set(b1.astype(f32).reshape(1, d2))
    b2_p = jnp.zeros((1, d_p), f32).at[:, :d].set(b2.astype(f32).reshape(1, d))
    gamma_p = jnp.zeros((1, d_p), f32).at[:, :d].set(gamma.astype(f32).reshape(1, d))
    beta_p = jnp.zeros((1, d_p), f32).at[:, :d].set(beta.astype(f32).reshape(1, d))

    grid = (n_p // tm,)
    row_tile = lambda i: (i, 0)     # streamed tensors (x, h2, out)
    const = lambda i: (0, 0)        # resident tensors (weights, vectors, stats)

    # ---- Phase 1: tiled h2 + batch-stat accumulation ------------------------
    kernel1 = functools.partial(_fwd_stats_kernel, block_n=tm, n_true=n,
                                needs_mask=needs_mask)
    h2_p, stats = pl.pallas_call(
        kernel1,
        out_shape=(jax.ShapeDtypeStruct((n_p, d_p), f32),
                   jax.ShapeDtypeStruct((2, d_p), f32)),
        grid=grid,
        in_specs=[pl.BlockSpec((tm, d_p), row_tile),
                  pl.BlockSpec((d_p, d2_p), const),
                  pl.BlockSpec((1, d2_p), const),
                  pl.BlockSpec((d2_p, d_p), const),
                  pl.BlockSpec((1, d_p), const)],
        out_specs=(pl.BlockSpec((tm, d_p), row_tile),
                   pl.BlockSpec((2, d_p), const)),
        compiler_params=pltpu.CompilerParams(
            dimension_semantics=("arbitrary",),   # stats accumulator revisited
            vmem_limit_bytes=vmem_limit_bytes),
    )(x_p, w1_p, b1_p, w2_p, b2_p)

    # ---- Finalize statistics; fold BN affine into scale/shift (tiny 1xD) ----
    mean = stats[0:1, :] / n
    var = stats[1:2, :] / n - mean * mean          # biased variance (training)
    inv_std = lax.rsqrt(var + BN_EPS)
    scale = inv_std * gamma_p                      # padded cols: gamma=0 -> 0
    shift = beta_p - mean * scale

    # ---- Phase 2: tiled, lane-dense normalize (single FMA per element) ------
    out_p = pl.pallas_call(
        _bn_apply_kernel,
        out_shape=jax.ShapeDtypeStruct((n_p, d_p), out_dtype),
        grid=grid,
        in_specs=[pl.BlockSpec((tm, d_p), row_tile),
                  pl.BlockSpec((1, d_p), const),
                  pl.BlockSpec((1, d_p), const)],
        out_specs=pl.BlockSpec((tm, d_p), row_tile),
        compiler_params=pltpu.CompilerParams(
            dimension_semantics=("parallel",),     # both TCs on v7x
            vmem_limit_bytes=vmem_limit_bytes),
    )(h2_p, scale, shift)

    # TODO(synk): BatchNorm1d running_mean/running_var updates (training-time
    # side effect) are not produced; only the forward output is computed.
    return out_p[:n, :d]


# ----------------------------------------------------------------------------
# Reference + synthetic init (matching nn.Linear / nn.BatchNorm1d)
# ----------------------------------------------------------------------------
def init_params(key, embed_dim):
    d, d2 = embed_dim, 2 * embed_dim
    k1, k2, k3, k4 = jax.random.split(key, 4)
    lim1 = 1.0 / jnp.sqrt(d)
    lim2 = 1.0 / jnp.sqrt(d2)
    w1 = jax.random.uniform(k1, (d, d2), jnp.float32, -lim1, lim1)   # (in, out)
    b1 = jax.random.uniform(k2, (1, d2), jnp.float32, -lim1, lim1)
    w2 = jax.random.uniform(k3, (d2, d), jnp.float32, -lim2, lim2)   # (in, out)
    b2 = jax.random.uniform(k4, (1, d), jnp.float32, -lim2, lim2)
    gamma = jnp.ones((1, d), jnp.float32)
    beta = jnp.zeros((1, d), jnp.float32)
    return w1, b1, w2, b2, gamma, beta


def reference_forward(x, w1, b1, w2, b2, gamma, beta):
    h1 = x @ w1 + b1
    h1 = jnp.where(h1 > 0, h1, NEG_SLOPE * h1)
    h2 = h1 @ w2 + b2
    h2 = jnp.where(h2 > 0, h2, NEG_SLOPE * h2)
    mean = jnp.mean(h2, axis=0, keepdims=True)
    var = jnp.mean((h2 - mean) ** 2, axis=0, keepdims=True)
    return (h2 - mean) / jnp.sqrt(var + BN_EPS) * gamma + beta


if __name__ == "__main__":
    embed_dim = 32
    batch = 8

    key = jax.random.PRNGKey(0)
    k_x, k_p = jax.random.split(key)
    x = jax.random.normal(k_x, (batch, embed_dim), jnp.float32)
    params = init_params(k_p, embed_dim)
    ref = reference_forward(x, *params)

    # f32 path (exact vs reference)
    out = jax.block_until_ready(filter_forward(x, *params))
    assert out.shape == (batch, embed_dim)
    assert jnp.allclose(out, ref, atol=1e-4, rtol=1e-4), "f32 mismatch"

    # bf16 MXU path (production config), f32 accumulation / BN math
    out_bf16 = jax.block_until_ready(
        filter_forward(x, *params, matmul_dtype=jnp.bfloat16))
    assert jnp.allclose(out_bf16, ref, atol=5e-2, rtol=5e-2), "bf16 mismatch"

    # ragged batch: exercises batch padding + stat masking across 3 tiles
    x2 = jax.random.normal(jax.random.PRNGKey(2), (20, embed_dim), jnp.float32)
    ref2 = reference_forward(x2, *params)
    out2 = jax.block_until_ready(filter_forward(x2, *params, block_n=8))
    assert out2.shape == (20, embed_dim)
    assert jnp.allclose(out2, ref2, atol=1e-4, rtol=1e-4), "ragged mismatch"

    print("KERNEL_OK")
</pallas_src>

<mosaic_0001>
module attributes {stable_mosaic.version = 11 : i64} {
  func.func @_fwd_stats_kernel(%arg0: i32, %arg1: memref<8x128xf32, #tpu.memory_space<vmem>>, %arg2: memref<128x128xf32, #tpu.memory_space<vmem>>, %arg3: memref<1x128xf32, #tpu.memory_space<vmem>>, %arg4: memref<128x128xf32, #tpu.memory_space<vmem>>, %arg5: memref<1x128xf32, #tpu.memory_space<vmem>>, %arg6: memref<8x128xf32, #tpu.memory_space<vmem>>, %arg7: memref<2x128xf32, #tpu.memory_space<vmem>>) attributes {dimension_semantics = [#tpu.dimension_semantics<arbitrary>], iteration_bounds = array<i64: 1>, scalar_prefetch = 0 : i64, scratch_operands = 0 : i64, tpu.core_type = #tpu.core_type<tc>, window_params = [{transform_indices = @transform_0, window_bounds = array<i64: 8, 128>}, {pipeline_mode = #tpu.pipeline_mode<synchronous>, transform_indices = @transform_1, window_bounds = array<i64: 128, 128>}, {pipeline_mode = #tpu.pipeline_mode<synchronous>, transform_indices = @transform_2, window_bounds = array<i64: 1, 128>}, {pipeline_mode = #tpu.pipeline_mode<synchronous>, transform_indices = @transform_3, window_bounds = array<i64: 128, 128>}, {pipeline_mode = #tpu.pipeline_mode<synchronous>, transform_indices = @transform_4, window_bounds = array<i64: 1, 128>}, {transform_indices = @transform_5, window_bounds = array<i64: 8, 128>}, {pipeline_mode = #tpu.pipeline_mode<synchronous>, transform_indices = @transform_6, window_bounds = array<i64: 2, 128>}]} {
    %c0_i32 = arith.constant 0 : i32
    %0 = arith.cmpi eq, %arg0, %c0_i32 : i32
    %1 = arith.extui %0 : i1 to i32
    %c0_i32_0 = arith.constant 0 : i32
    %2 = arith.cmpi ne, %1, %c0_i32_0 : i32
    scf.if %2 {
      %cst_23 = arith.constant 0.000000e+00 : f32
      %34 = vector.broadcast %cst_23 : f32 to vector<2x128xf32>
      %c0_24 = arith.constant 0 : index
      %c0_25 = arith.constant 0 : index
      %35 = vector.load %arg7[%c0_24, %c0_25] : memref<2x128xf32, #tpu.memory_space<vmem>>, vector<2x128xf32>
      tpu.vector_store %arg7[%c0_24, %c0_25], %34 {strides = array<i32>} : memref<2x128xf32, #tpu.memory_space<vmem>>, vector<2x128xf32>,
    } else {
    }
    %c0 = arith.constant 0 : index
    %c0_1 = arith.constant 0 : index
    %3 = vector.load %arg1[%c0, %c0_1] : memref<8x128xf32, #tpu.memory_space<vmem>>, vector<8x128xf32>
    %c0_2 = arith.constant 0 : index
    %c0_3 = arith.constant 0 : index
    %4 = vector.load %arg2[%c0_2, %c0_3] : memref<128x128xf32, #tpu.memory_space<vmem>>, vector<128x128xf32>
    %cst = arith.constant dense<0.000000e+00> : vector<8x128xf32>
    %5 = tpu.matmul %3, %4, %cst {dimension_numbers = #tpu.dot_dimension_numbers<[1], [0], [0], [1], [0, 0, 1, 1], [], []>} : vector<8x128xf32>, vector<128x128xf32>, vector<8x128xf32> -> vector<8x128xf32>
    %c0_4 = arith.constant 0 : index
    %c0_5 = arith.constant 0 : index
    %6 = vector.load %arg3[%c0_4, %c0_5] : memref<1x128xf32, #tpu.memory_space<vmem>>, vector<1x128xf32>
    %7 = vector.broadcast %6 : vector<1x128xf32> to vector<8x128xf32>
    %8 = arith.addf %5, %7 : vector<8x128xf32>
    %cst_6 = arith.constant 0.000000e+00 : f32
    %9 = vector.broadcast %cst_6 : f32 to vector<8x128xf32>
    %10 = arith.cmpf ogt, %8, %9 : vector<8x128xf32>
    %cst_7 = arith.constant 0.00999999977 : f32
    %11 = vector.broadcast %cst_7 : f32 to vector<8x128xf32>
    %12 = arith.mulf %11, %8 : vector<8x128xf32>
    %13 = arith.select %10, %8, %12 : vector<8x128xi1>, vector<8x128xf32>
    %c0_8 = arith.constant 0 : index
    %c0_9 = arith.constant 0 : index
    %14 = vector.load %arg4[%c0_8, %c0_9] : memref<128x128xf32, #tpu.memory_space<vmem>>, vector<128x128xf32>
    %cst_10 = arith.constant dense<0.000000e+00> : vector<8x128xf32>
    %15 = tpu.matmul %13, %14, %cst_10 {dimension_numbers = #tpu.dot_dimension_numbers<[1], [0], [0], [1], [0, 0, 1, 1], [], []>} : vector<8x128xf32>, vector<128x128xf32>, vector<8x128xf32> -> vector<8x128xf32>
    %c0_11 = arith.constant 0 : index
    %c0_12 = arith.constant 0 : index
    %16 = vector.load %arg5[%c0_11, %c0_12] : memref<1x128xf32, #tpu.memory_space<vmem>>, vector<1x128xf32>
    %17 = vector.broadcast %16 : vector<1x128xf32> to vector<8x128xf32>
    %18 = arith.addf %15, %17 : vector<8x128xf32>
    %cst_13 = arith.constant 0.000000e+00 : f32
    %19 = vector.broadcast %cst_13 : f32 to vector<8x128xf32>
    %20 = arith.cmpf ogt, %18, %19 : vector<8x128xf32>
    %cst_14 = arith.constant 0.00999999977 : f32
    %21 = vector.broadcast %cst_14 : f32 to vector<8x128xf32>
    %22 = arith.mulf %21, %18 : vector<8x128xf32>
    %23 = arith.select %20, %18, %22 : vector<8x128xi1>, vector<8x128xf32>
    %c0_15 = arith.constant 0 : index
    %c0_16 = arith.constant 0 : index
    %24 = vector.load %arg6[%c0_15, %c0_16] : memref<8x128xf32, #tpu.memory_space<vmem>>, vector<8x128xf32>
    tpu.vector_store %arg6[%c0_15, %c0_16], %23 {strides = array<i32>} : memref<8x128xf32, #tpu.memory_space<vmem>>, vector<8x128xf32>,
    %cst_17 = arith.constant dense<0.000000e+00> : vector<128xf32>
    %25 = vector.multi_reduction <add>, %23, %cst_17 [0] : vector<8x128xf32> to vector<128xf32>
    %26 = vector.shape_cast %25 : vector<128xf32> to vector<1x128xf32>
    %27 = arith.mulf %23, %23 : vector<8x128xf32>
    %cst_18 = arith.constant dense<0.000000e+00> : vector<128xf32>
    %28 = vector.multi_reduction <add>, %27, %cst_18 [0] : vector<8x128xf32> to vector<128xf32>
    %29 = vector.shape_cast %28 : vector<128xf32> to vector<1x128xf32>
    %c0_19 = arith.constant 0 : index
    %c0_20 = arith.constant 0 : index
    %30 = vector.load %arg7[%c0_19, %c0_20] : memref<2x128xf32, #tpu.memory_space<vmem>>, vector<2x128xf32>
    %31 = tpu.concatenate %26, %29 in 0 : vector<1x128xf32>, vector<1x128xf32> -> vector<2x128xf32>
    %32 = arith.addf %30, %31 : vector<2x128xf32>
    %c0_21 = arith.constant 0 : index
    %c0_22 = arith.constant 0 : index
    %33 = vector.load %arg7[%c0_21, %c0_22] : memref<2x128xf32, #tpu.memory_space<vmem>>, vector<2x128xf32>
    tpu.vector_store %arg7[%c0_21, %c0_22], %32 {strides = array<i32>} : memref<2x128xf32, #tpu.memory_space<vmem>>, vector<2x128xf32>,
    return
  }
  func.func @transform_0(%arg0: i32) -> (i32, i32) {
    %c0_i32 = arith.constant 0 : i32
    %c0_i32_0 = arith.constant 0 : i32
    return %arg0, %c0_i32 : i32, i32
  }
  func.func @transform_1(%arg0: i32) -> (i32, i32) {
    %c0_i32 = arith.constant 0 : i32
    %c0_i32_0 = arith.constant 0 : i32
    %c0_i32_1 = arith.constant 0 : i32
    return %c0_i32, %c0_i32_0 : i32, i32
  }
  func.func @transform_2(%arg0: i32) -> (i32, i32) {
    %c0_i32 = arith.constant 0 : i32
    %c0_i32_0 = arith.constant 0 : i32
    %c0_i32_1 = arith.constant 0 : i32
    return %c0_i32, %c0_i32_0 : i32, i32
  }
  func.func @transform_3(%arg0: i32) -> (i32, i32) {
    %c0_i32 = arith.constant 0 : i32
    %c0_i32_0 = arith.constant 0 : i32
    %c0_i32_1 = arith.constant 0 : i32
    return %c0_i32, %c0_i32_0 : i32, i32
  }
  func.func @transform_4(%arg0: i32) -> (i32, i32) {
    %c0_i32 = arith.constant 0 : i32
    %c0_i32_0 = arith.constant 0 : i32
    %c0_i32_1 = arith.constant 0 : i32
    return %c0_i32, %c0_i32_0 : i32, i32
  }
  func.func @transform_5(%arg0: i32) -> (i32, i32) {
    %c0_i32 = arith.constant 0 : i32
    %c0_i32_0 = arith.constant 0 : i32
    return %arg0, %c0_i32 : i32, i32
  }
  func.func @transform_6(%arg0: i32) -> (i32, i32) {
    %c0_i32 = arith.constant 0 : i32
    %c0_i32_0 = arith.constant 0 : i32
    %c0_i32_1 = arith.constant 0 : i32
    return %c0_i32, %c0_i32_0 : i32, i32
  }
}

</mosaic_0001>

<llo_original>
// kernel: tpu_custom_call.1
$region0: #{tpu_custom_call.1}
  #allocation0 [shape = 'u32[]', space=smem, size = 0x4, offset = 0x4, fixed_abs, tag = 'smem constant byte address 0x4 - core index']
  #allocation1 [shape = 'u32[144,128]{1,0:T(1,128)}', space=vmem, size = 0x12000, scoped, tag = 'internal scratch']
  %s0 = inlined_call_operand.hbm [shape: f32[8,128], index: 0, kind: input, shape index: {}]
  %s1 = inlined_call_operand.hbm [shape: f32[128,128], index: 1, kind: input, shape index: {}]
  %s2 = inlined_call_operand.vmem [shape: f32[1,128], index: 2, kind: input, shape index: {}]
  %s3 = inlined_call_operand.hbm [shape: f32[128,128], index: 3, kind: input, shape index: {}]
  %s4 = inlined_call_operand.vmem [shape: f32[1,128], index: 4, kind: input, shape index: {}]
  %s5 = inlined_call_operand.hbm [shape: f32[8,128], index: 5, kind: output, shape index: {0}]
  %s6 = inlined_call_operand.hbm [shape: f32[2,128], index: 6, kind: output, shape index: {1}]
  %7 = xla_tuple %s5, %s6
  %s8 = sld [smem:[#allocation0]]
  $region54: #{tpu_custom_call.1} parent=0
    _
  %s10 = ssub.s32 1, %s8
  %s11 = scalar_select 0, %s10, %s8
  $region1: #{tpu_custom_call.1} parent=0
    #allocation2 [shape = 'u8[4096]{0}', space=vmem, size = 0x1000, scoped, tag = 'input window, operand 0, single buffered']
    #allocation3 [shape = 's32[1]{0}', space=sflag, size = 0x4, scoped, tag = 'scoped memory for tpu_custom_call.1']
    #allocation4 [shape = 's32[1]{0}', space=sflag, size = 0x4, scoped, tag = 'scoped memory for tpu_custom_call.1']
    #allocation5 [shape = 'u8[65536]{0}', space=vmem, size = 0x10000, scoped, tag = 'input window, operand 1, single buffered']
    #allocation6 [shape = 's32[1]{0}', space=sflag, size = 0x4, scoped, tag = 'scoped memory for tpu_custom_call.1']
    #allocation7 [shape = 'u8[65536]{0}', space=vmem, size = 0x10000, scoped, tag = 'input window, operand 3, single buffered']
    #allocation8 [shape = 'u8[4096]{0}', space=vmem, size = 0x1000, scoped, tag = 'output window, operand 0, single buffered']
    #allocation9 [shape = 'u8[1024]{0}', space=vmem, size = 0x400, scoped, tag = 'output window, operand 1, single buffered']
    #allocation10 [shape = 's32[1]{0}', space=sflag, size = 0x4, scoped, tag = 'scoped memory for tpu_custom_call.1']
    %12 = vsyncpa [#allocation3], 0
    %13 = vsyncpa [#allocation6], 0
    %14 = vsyncpa [#allocation4], 0
    %15 = vsyncpa [#allocation10], 0
    // Predicated region
    $region2: #{tpu_custom_call.1} parent=1 // pred_check
      _
    $region3: #{tpu_custom_call.1} parent=1 // pred_check_branch
      %17 = sbr.rel (0) target = $region5
    $region4: #{tpu_custom_call.1} parent=1 // pred_region
      %s19 = ssub.s32 128, 128
      %20 = vsyncadd [#allocation3], %s19
      %s22 = sshll.u32 [#allocation2], 4
      %s23 = int_to_ptr.vmem [resolvable:$true] %s22
      %25 = dma.hbm_to_vmem [thread:$0]  %s0, 128, %s23, [#allocation3]
    $region5: #{tpu_custom_call.1} parent=1 // pred_fallthru
      _
    // Predicated region
    $region6: #{tpu_custom_call.1} parent=1 // pred_check
      _
    $region7: #{tpu_custom_call.1} parent=1 // pred_check_branch
      %27 = sbr.rel (0) target = $region9
    $region8: #{tpu_custom_call.1} parent=1 // pred_region
      %s29 = ssub.s32 2048, 2048
      %30 = vsyncadd [#allocation6], %s29
      %s31 = sshll.u32 [#allocation5], 4
      %s32 = int_to_ptr.vmem [resolvable:$true] %s31
      %37 = dma.hbm_to_vmem [thread:$0]  %s1, 2048, %s32, [#allocation6], 128, 128, 8
    $region9: #{tpu_custom_call.1} parent=1 // pred_fallthru
      _
    // Predicated region
    $region10: #{tpu_custom_call.1} parent=1 // pred_check
      _
    $region11: #{tpu_custom_call.1} parent=1 // pred_check_branch
      %39 = sbr.rel (0) target = $region13
    $region12: #{tpu_custom_call.1} parent=1 // pred_region
      _
    $region13: #{tpu_custom_call.1} parent=1 // pred_fallthru
      _
    // Predicated region
    $region14: #{tpu_custom_call.1} parent=1 // pred_check
      _
    $region15: #{tpu_custom_call.1} parent=1 // pred_check_branch
      %41 = sbr.rel (0) target = $region17
    $region16: #{tpu_custom_call.1} parent=1 // pred_region
      %s43 = ssub.s32 2048, 2048
      %44 = vsyncadd [#allocation6], %s43
      %s45 = sshll.u32 [#allocation7], 4
      %s46 = int_to_ptr.vmem [resolvable:$true] %s45
      %51 = dma.hbm_to_vmem [thread:$0]  %s3, 2048, %s46, [#allocation6], 128, 128, 8
    $region17: #{tpu_custom_call.1} parent=1 // pred_fallthru
      _
    // Predicated region
    $region18: #{tpu_custom_call.1} parent=1 // pred_check
      _
    $region19: #{tpu_custom_call.1} parent=1 // pred_check_branch
      %53 = sbr.rel (0) target = $region21
    $region20: #{tpu_custom_call.1} parent=1 // pred_region
      _
    $region21: #{tpu_custom_call.1} parent=1 // pred_fallthru
      _
    // Predicated region
    $region22: #{tpu_custom_call.1} parent=1 // pred_check
      _
    $region23: #{tpu_custom_call.1} parent=1 // pred_check_branch
      %55 = sbr.rel (0) target = $region25
    $region24: #{tpu_custom_call.1} parent=1 // pred_region
      %56 = dma.done [#allocation3], 128
    $region25: #{tpu_custom_call.1} parent=1 // pred_fallthru
      _
    // Predicated region
    $region26: #{tpu_custom_call.1} parent=1 // pred_check
      _
    $region27: #{tpu_custom_call.1} parent=1 // pred_check_branch
      %58 = sbr.rel (0) target = $region29
    $region28: #{tpu_custom_call.1} parent=1 // pred_region
      %59 = dma.done [#allocation6], 2048
    $region29: #{tpu_custom_call.1} parent=1 // pred_fallthru
      _
    // Predicated region
    $region30: #{tpu_custom_call.1} parent=1 // pred_check
      _
    $region31: #{tpu_custom_call.1} parent=1 // pred_check_branch
      %61 = sbr.rel (0) target = $region33
    $region32: #{tpu_custom_call.1} parent=1 // pred_region
      %62 = dma.done [#allocation6], 2048
    $region33: #{tpu_custom_call.1} parent=1 // pred_fallthru
      _
    %p63 = scmp.eq.s32.totalorder 0, 0
    // Predicated region
    $region34: #{tpu_custom_call.1} parent=1 // pred_check
      %p64 = pneg %p63
    $region35: #{tpu_custom_call.1} parent=1 // pred_check_branch
      %66 = sbr.rel (%p64) target = $region37
    $region36: #{tpu_custom_call.1} parent=1 // pred_region
      %67 = vst [vmem:[#allocation9] sm:$0x3] 0.0
    $region37: #{tpu_custom_call.1} parent=1 // pred_fallthru
      _
    %v68 = vld [vmem:[#allocation2] sm:$0xff]
    %v69 = vld [vmem:[#allocation5] sm:$0xff]
    %v70 = vld [vmem:[#allocation5 + $0x8] sm:$0xff]
    %v71 = vld [vmem:[#allocation5 + $0x10] sm:$0xff]
    %v72 = vld [vmem:[#allocation5 + $0x18] sm:$0xff]
    %v73 = vld [vmem:[#allocation5 + $0x20] sm:$0xff]
    %v74 = vld [vmem:[#allocation5 + $0x28] sm:$0xff]
    %v75 = vld [vmem:[#allocation5 + $0x30] sm:$0xff]
    %v76 = vld [vmem:[#allocation5 + $0x38] sm:$0xff]
    %v77 = vld [vmem:[#allocation5 + $0x40] sm:$0xff]
    %v78 = vld [vmem:[#allocation5 + $0x48] sm:$0xff]
    %v79 = vld [vmem:[#allocation5 + $0x50] sm:$0xff]
    %v80 = vld [vmem:[#allocation5 + $0x58] sm:$0xff]
    %v81 = vld [vmem:[#allocation5 + $0x60] sm:$0xff]
    %v82 = vld [vmem:[#allocation5 + $0x68] sm:$0xff]
    %v83 = vld [vmem:[#allocation5 + $0x70] sm:$0xff]
    %v84 = vld [vmem:[#allocation5 + $0x78] sm:$0xff]
    %v85 = vld [vmem:[%s2] sm:$0x1]
    %v87 = vlaneseq
    %v88 = vshrl.u32 %v87, 7
    %v89 = vsub.s32 0, %v88
    %v90 = vrot.slane %v85, %v89
    %92 = vmatprep.subr.mxu0 0.0
    %93 = vmatpush1.msra.mxu0 %v69
    %94 = vmatprep.subr.mxu0 0.0
    %95 = vmatpush1.msra.mxu0 %v70
    %96 = vmatprep.subr.mxu0 0.0
    %97 = vmatpush1.msra.mxu0 %v71
    %98 = vmatprep.subr.mxu0 0.0
    %99 = vmatpush1.msra.mxu0 %v72
    %100 = vmatprep.subr.mxu0 0.0
    %101 = vmatpush1.msra.mxu0 %v73
    %102 = vmatprep.subr.mxu0 0.0
    %103 = vmatpush1.msra.mxu0 %v74
    %104 = vmatprep.subr.mxu0 0.0
    %105 = vmatpush1.msra.mxu0 %v75
    %106 = vmatprep.subr.mxu0 0.0
    %107 = vmatpush1.msra.mxu0 %v76
    %108 = vmatprep.subr.mxu0 0.0
    %109 = vmatpush1.msra.mxu0 %v77
    %110 = vmatprep.subr.mxu0 0.0
    %111 = vmatpush1.msra.mxu0 %v78
    %112 = vmatprep.subr.mxu0 0.0
    %113 = vmatpush1.msra.mxu0 %v79
    %114 = vmatprep.subr.mxu0 0.0
    %115 = vmatpush1.msra.mxu0 %v80
    %116 = vmatprep.subr.mxu0 0.0
    %117 = vmatpush1.msra.mxu0 %v81
    %118 = vmatprep.subr.mxu0 0.0
    %119 = vmatpush1.msra.mxu0 %v82
    %120 = vmatprep.subr.mxu0 0.0
    %121 = vmatpush1.msra.mxu0 %v83
    %122 = vmatprep.subr.mxu0 0.0
    %123 = vmatpush1.msra.mxu0 %v84
    %124 = vmatprep.subr.mxu0 0.0
    %125 = vmatpush1.msra.mxu0 0.0
    %126 = vmatprep.subr.mxu0 0.0
    %127 = vmatpush1.msra.mxu0 0.0
    %128 = vmatprep.subr.mxu0 0.0
    %129 = vmatpush1.msra.mxu0 0.0
    %130 = vmatprep.subr.mxu0 0.0
    %131 = vmatpush1.msra.mxu0 0.0
    %132 = vmatprep.subr.mxu0 0.0
    %133 = vmatpush1.msra.mxu0 0.0
    %134 = vmatprep.subr.mxu0 0.0
    %135 = vmatpush1.msra.mxu0 0.0
    %136 = vmatprep.subr.mxu0 0.0
    %137 = vmatpush1.msra.mxu0 0.0
    %138 = vmatprep.subr.mxu0 0.0
    %139 = vmatpush1.msra.mxu0 0.0
    %140 = vmatprep.subr.mxu0 0.0
    %141 = vmatpush1.msra.mxu0 0.0
    %142 = vmatprep.subr.mxu0 0.0
    %143 = vmatpush1.msra.mxu0 0.0
    %144 = vmatprep.subr.mxu0 0.0
    %145 = vmatpush1.msra.mxu0 0.0
    %146 = vmatprep.subr.mxu0 0.0
    %147 = vmatpush1.msra.mxu0 0.0
    %148 = vmatprep.subr.mxu0 0.0
    %149 = vmatpush1.msra.mxu0 0.0
    %150 = vmatprep.subr.mxu0 0.0
    %151 = vmatpush1.msra.mxu0 0.0
    %152 = vmatprep.subr.mxu0 0.0
    %153 = vmatpush1.msra.mxu0 0.0
    %154 = vmatprep.subr.mxu0 0.0
    %155 = vmatpush1.msra.mxu0 0.0
    %156 = vmatprep.mubr.f32.mxu0 0.0
    %157 = vmatmul.mubr.f32.gmra.mrb[0].mxu0 %v68
    %v158 = vpop.f32.mrb[0].mxu0
    %v159 = vadd.f32 %v90, %v158
    %v160 = vpop.f32.mrb[0].mxu0
    %161 = vdwg.mxu0
    %vm162 = vcmp.gt.f32.partialorder %v159, 0.0
    %v163 = vmul.f32 %v159, 0.01
    %v164 = vsel %vm162, %v159, %v163
    %v165 = vld [vmem:[#allocation7] sm:$0xff]
    %v166 = vld [vmem:[#allocation7 + $0x8] sm:$0xff]
    %v167 = vld [vmem:[#allocation7 + $0x10] sm:$0xff]
    %v168 = vld [vmem:[#allocation7 + $0x18] sm:$0xff]
    %v169 = vld [vmem:[#allocation7 + $0x20] sm:$0xff]
    %v170 = vld [vmem:[#allocation7 + $0x28] sm:$0xff]
    %v171 = vld [vmem:[#allocation7 + $0x30] sm:$0xff]
    %v172 = vld [vmem:[#allocation7 + $0x38] sm:$0xff]
    %v173 = vld [vmem:[#allocation7 + $0x40] sm:$0xff]
    %v174 = vld [vmem:[#allocation7 + $0x48] sm:$0xff]
    %v175 = vld [vmem:[#allocation7 + $0x50] sm:$0xff]
    %v176 = vld [vmem:[#allocation7 + $0x58] sm:$0xff]
    %v177 = vld [vmem:[#allocation7 + $0x60] sm:$0xff]
    %v178 = vld [vmem:[#allocation7 + $0x68] sm:$0xff]
    %v179 = vld [vmem:[#allocation7 + $0x70] sm:$0xff]
    %v180 = vld [vmem:[#allocation7 + $0x78] sm:$0xff]
    %v181 = vld [vmem:[%s4] sm:$0x1]
    %v183 = vlaneseq
    %v184 = vshrl.u32 %v183, 7
    %v185 = vsub.s32 0, %v184
    %v186 = vrot.slane %v181, %v185
    %188 = vmatprep.subr.mxu0 0.0
    %189 = vmatpush1.msra.mxu0 %v165
    %190 = vmatprep.subr.mxu0 0.0
    %191 = vmatpush1.msra.mxu0 %v166
    %192 = vmatprep.subr.mxu0 0.0
    %193 = vmatpush1.msra.mxu0 %v167
    %194 = vmatprep.subr.mxu0 0.0
    %195 = vmatpush1.msra.mxu0 %v168
    %196 = vmatprep.subr.mxu0 0.0
    %197 = vmatpush1.msra.mxu0 %v169
    %198 = vmatprep.subr.mxu0 0.0
    %199 = vmatpush1.msra.mxu0 %v170
    %200 = vmatprep.subr.mxu0 0.0
    %201 = vmatpush1.msra.mxu0 %v171
    %202 = vmatprep.subr.mxu0 0.0
    %203 = vmatpush1.msra.mxu0 %v172
    %204 = vmatprep.subr.mxu0 0.0
    %205 = vmatpush1.msra.mxu0 %v173
    %206 = vmatprep.subr.mxu0 0.0
    %207 = vmatpush1.msra.mxu0 %v174
    %208 = vmatprep.subr.mxu0 0.0
    %209 = vmatpush1.msra.mxu0 %v175
    %210 = vmatprep.subr.mxu0 0.0
    %211 = vmatpush1.msra.mxu0 %v176
    %212 = vmatprep.subr.mxu0 0.0
    %213 = vmatpush1.msra.mxu0 %v177
    %214 = vmatprep.subr.mxu0 0.0
    %215 = vmatpush1.msra.mxu0 %v178
    %216 = vmatprep.subr.mxu0 0.0
    %217 = vmatpush1.msra.mxu0 %v179
    %218 = vmatprep.subr.mxu0 0.0
    %219 = vmatpush1.msra.mxu0 %v180
    %220 = vmatprep.subr.mxu0 0.0
    %221 = vmatpush1.msra.mxu0 0.0
    %222 = vmatprep.subr.mxu0 0.0
    %223 = vmatpush1.msra.mxu0 0.0
    %224 = vmatprep.subr.mxu0 0.0
    %225 = vmatpush1.msra.mxu0 0.0
    %226 = vmatprep.subr.mxu0 0.0
    %227 = vmatpush1.msra.mxu0 0.0
    %228 = vmatprep.subr.mxu0 0.0
    %229 = vmatpush1.msra.mxu0 0.0
    %230 = vmatprep.subr.mxu0 0.0
    %231 = vmatpush1.msra.mxu0 0.0
    %232 = vmatprep.subr.mxu0 0.0
    %233 = vmatpush1.msra.mxu0 0.0
    %234 = vmatprep.subr.mxu0 0.0
    %235 = vmatpush1.msra.mxu0 0.0
    %236 = vmatprep.subr.mxu0 0.0
    %237 = vmatpush1.msra.mxu0 0.0
    %238 = vmatprep.subr.mxu0 0.0
    %239 = vmatpush1.msra.mxu0 0.0
    %240 = vmatprep.subr.mxu0 0.0
    %241 = vmatpush1.msra.mxu0 0.0
    %242 = vmatprep.subr.mxu0 0.0
    %243 = vmatpush1.msra.mxu0 0.0
    %244 = vmatprep.subr.mxu0 0.0
    %245 = vmatpush1.msra.mxu0 0.0
    %246 = vmatprep.subr.mxu0 0.0
    %247 = vmatpush1.msra.mxu0 0.0
    %248 = vmatprep.subr.mxu0 0.0
    %249 = vmatpush1.msra.mxu0 0.0
    %250 = vmatprep.subr.mxu0 0.0
    %251 = vmatpush1.msra.mxu0 0.0
    %252 = vmatprep.mubr.f32.mxu0 0.0
    %253 = vmatmul.mubr.f32.gmra.mrb[0].mxu0 %v164
    %v254 = vpop.f32.mrb[0].mxu0
    %v255 = vadd.f32 %v186, %v254
    %v256 = vpop.f32.mrb[0].mxu0
    %257 = vdwg.mxu0
    %vm258 = vcmp.gt.f32.partialorder %v255, 0.0
    %v259 = vmul.f32 %v255, 0.01
    %v260 = vsel %vm258, %v255, %v259
    %261 = vst [vmem:[#allocation8] sm:$0xff] %v260
    %v262 = vrot.slane %v260, 4
    %v263 = vadd.f32 %v260, %v262
    %v264 = vrot.slane %v263, 2
    %v265 = vadd.f32 %v263, %v264
    %v266 = vrot.slane %v265, 1
    %v267 = vadd.f32 %v265, %v266
    %v268 = vmul.f32 %v260, %v260
    %v269 = vrot.slane %v268, 4
    %v270 = vadd.f32 %v268, %v269
    %v271 = vrot.slane %v270, 2
    %v272 = vadd.f32 %v270, %v271
    %v273 = vrot.slane %v272, 1
    %v274 = vadd.f32 %v272, %v273
    %v275 = vld [vmem:[#allocation9] sm:$0x3]
    %vm276 = vcmask 1040384
    %v277 = vsel %vm276, %v267, %v274
    %v278 = vadd.f32 %v275, %v277
    %279 = vst [vmem:[#allocation9] sm:$0x3] %v278
    // Predicated region
    $region38: #{tpu_custom_call.1} parent=1 // pred_check
      _
    $region39: #{tpu_custom_call.1} parent=1 // pred_check_branch
      %281 = sbr.rel (0) target = $region41
    $region40: #{tpu_custom_call.1} parent=1 // pred_region
      %s283 = ssub.s32 128, 128
      %284 = vsyncadd [#allocation4], %s283
      %s286 = sshll.u32 [#allocation8], 4
      %s287 = int_to_ptr.vmem [resolvable:$true] %s286
      %289 = dma.vmem_to_hbm [thread:$0]  %s287, 128, %s5, [#allocation4]
    $region41: #{tpu_custom_call.1} parent=1 // pred_fallthru
      _
    // Predicated region
    $region42: #{tpu_custom_call.1} parent=1 // pred_check
      _
    $region43: #{tpu_custom_call.1} parent=1 // pred_check_branch
      %291 = sbr.rel (0) target = $region45
    $region44: #{tpu_custom_call.1} parent=1 // pred_region
      %s293 = ssub.s32 32, 32
      %294 = vsyncadd [#allocation10], %s293
      %s296 = sshll.u32 [#allocation9], 4
      %s297 = int_to_ptr.vmem [resolvable:$true] %s296
      %299 = dma.vmem_to_hbm [thread:$0]  %s297, 32, %s6, [#allocation10]
    $region45: #{tpu_custom_call.1} parent=1 // pred_fallthru
      _
    // Predicated region
    $region46: #{tpu_custom_call.1} parent=1 // pred_check
      _
    $region47: #{tpu_custom_call.1} parent=1 // pred_check_branch
      %301 = sbr.rel (0) target = $region49
    $region48: #{tpu_custom_call.1} parent=1 // pred_region
      %302 = dma.done [#allocation4], 128
    $region49: #{tpu_custom_call.1} parent=1 // pred_fallthru
      _
    // Predicated region
    $region50: #{tpu_custom_call.1} parent=1 // pred_check
      _
    $region51: #{tpu_custom_call.1} parent=1 // pred_check_branch
      %304 = sbr.rel (0) target = $region53
    $region52: #{tpu_custom_call.1} parent=1 // pred_region
      %305 = dma.done [#allocation10], 32
    $region53: #{tpu_custom_call.1} parent=1 // pred_fallthru
      _
    %306 = vsyncpa [#allocation3], 1
    %307 = vsyncpa [#allocation6], 1
    %308 = vsyncpa [#allocation4], 1
    %309 = vsyncpa [#allocation10], 1

</llo_original>
